<compile_context>
chip_gen: v7x
topology: tpu7x:2x2x1
jax: 0.10.0
libtpu: 0.0.40
codegen_flags: <defaults>
</compile_context>

<pallas_src>
import functools

import jax
import jax.numpy as jnp
from jax.experimental import pallas as pl
from jax.experimental.pallas import tpu as pltpu

LANE = 128            # vreg lane width
SUBLANE = 8           # f32 sublanes per vreg
MAX_SINGLE_TC_ROWS = 2048   # single-TC parts: one big batch block up to this
SAT_WEIGHT = 30.0     # tanh(30) rounds to exactly 1.0f (bias-fold lane)


def _round_up(x, m):
    return ((x + m - 1) // m) * m


def _tensorcores_per_device():
    """Conservative TC count: only v7x is treated as 2 TCs per device."""
    try:
        kind = jax.devices()[0].device_kind.lower()
    except Exception:
        return 1
    return 2 if "v7" in kind else 1


def _batch_blocking(batch):
    """Pick (padded batch, rows per block) per generation."""
    b_pad = _round_up(max(batch, SUBLANE), SUBLANE)
    n_tc = _tensorcores_per_device()
    if n_tc > 1 and b_pad >= 2 * SUBLANE:
        # Split evenly across the two TensorCores (v7x).
        bb = _round_up(-(-b_pad // n_tc), SUBLANE)
    else:
        # Single TC (v5e/v6e): one big block, no per-grid-step overhead.
        bb = min(b_pad, MAX_SINGLE_TC_ROWS)
    b_pad = _round_up(b_pad, bb)
    return b_pad, bb


# ----------------------------------------------------------------------------
# Pallas kernel: full recurrent rollout, fused RNN cell + action head.
#   grid = (batch_blocks [parallel], T [arbitrary])
#   x   : [T, B_pad, K_pad]   per-step slab [obs_t | 1 | 0-pad]
#   m0  : [B_pad, N_pad]      initial memory in lanes [0, HID)
#   w1  : [K_pad, N_pad]      Wx rows [0,OBS), bh in row OBS, SAT_WEIGHT at
#                             (OBS, N_pad-1) so h[:, -1] == 1.0 (bias-fold lane)
#   wh  : [N_pad, N_pad]      Wh in [0,HID)x[0,HID); zero elsewhere, so the
#                             carried slab's action / sat lanes contribute 0
#   w2  : [N_pad, N_pad]      Wa in rows [0,HID), cols [HID,HID+ACT);
#                             ba in row N_pad-1, cols [HID,HID+ACT)
#   out : [T, B_pad, N_pad]   per step: lanes [0,HID)=h (memory), [HID,HID+ACT)=action
# ----------------------------------------------------------------------------
def _fused_rollout_kernel(x_ref, m0_ref, w1_ref, wh_ref, w2_ref, out_ref, mem_sc):
    t = pl.program_id(1)

    @pl.when(t == 0)
    def _():
        mem_sc[...] = m0_ref[...]

    x = x_ref[0]
    # Layer 1: obs matmul (bias folded via ones column) + memory matmul.
    h = jnp.tanh(
        jnp.dot(x, w1_ref[...], preferred_element_type=jnp.float32)
        + jnp.dot(mem_sc[...], wh_ref[...], preferred_element_type=jnp.float32)
    )
    # Action head; ba arrives through the saturated (==1.0) lane of h.
    a = jnp.tanh(jnp.dot(h, w2_ref[...], preferred_element_type=jnp.float32))
    # h is zero in the action lanes, a is zero in the hidden/sat lanes:
    # one VPU add packs memory + action into a single lane-dense slab.
    slab = h + a
    mem_sc[...] = slab          # carried state; wh zeroes non-hidden rows
    out_ref[0] = slab


def pack_policy_params(wx, wh, bh, wa, ba):
    """One-time packing of (Wx, Wh, bh, Wa, ba) into tile-aligned fused mats."""
    obs_dim, hid = wx.shape
    act = wa.shape[1]
    k_pad = _round_up(obs_dim + 1, LANE)          # [obs | 1 | 0-pad]
    n_pad = _round_up(hid + act, LANE)
    sat = n_pad - 1
    assert hid + act <= sat, "saturation lane must stay outside output slices"

    w1 = jnp.zeros((k_pad, n_pad), jnp.float32)
    w1 = w1.at[:obs_dim, :hid].set(wx.astype(jnp.float32))
    w1 = w1.at[obs_dim, :hid].set(bh.reshape(-1).astype(jnp.float32))
    w1 = w1.at[obs_dim, sat].set(SAT_WEIGHT)      # ones column -> tanh -> 1.0

    whf = jnp.zeros((n_pad, n_pad), jnp.float32)
    whf = whf.at[:hid, :hid].set(wh.astype(jnp.float32))

    w2 = jnp.zeros((n_pad, n_pad), jnp.float32)
    w2 = w2.at[:hid, hid:hid + act].set(wa.astype(jnp.float32))
    w2 = w2.at[sat, hid:hid + act].set(ba.reshape(-1).astype(jnp.float32))

    return w1, whf, w2, obs_dim, hid, act


@functools.partial(jax.jit, static_argnames=("obs_dim", "hid", "act"))
def fused_policy_rollout(obs_seq, mem0, w1, whf, w2, *, obs_dim, hid, act):
    """T recurrent steps inside ONE pallas_call (weights & memory resident)."""
    t_steps, batch = obs_seq.shape[0], obs_seq.shape[1]
    k_pad, n_pad = w1.shape
    b_pad, bb = _batch_blocking(batch)

    # Lane-dense per-step input slab [obs_t | 1 | 0-pad]; ones column only on
    # real rows, batch padding rows stay all-zero.  Single concat + pad.
    x = jnp.concatenate(
        [obs_seq.astype(jnp.float32),
         jnp.ones((t_steps, batch, 1), jnp.float32),
         jnp.zeros((t_steps, batch, k_pad - obs_dim - 1), jnp.float32)],
        axis=-1)
    x = jnp.pad(x, ((0, 0), (0, b_pad - batch), (0, 0)))

    m0 = jnp.concatenate(
        [mem0.astype(jnp.float32),
         jnp.zeros((batch, n_pad - hid), jnp.float32)], axis=-1)
    m0 = jnp.pad(m0, ((0, b_pad - batch), (0, 0)))

    nb = b_pad // bb
    grid = (nb, t_steps)

    steps = nb * t_steps
    flops = steps * 2 * bb * n_pad * (k_pad + 2 * n_pad)
    transcendentals = steps * 2 * bb * n_pad
    bytes_accessed = 4 * (
        t_steps * b_pad * k_pad                     # x
        + b_pad * n_pad                             # m0
        + k_pad * n_pad + 2 * n_pad * n_pad         # weights (resident)
        + t_steps * b_pad * n_pad)                  # output slab

    slab = pl.pallas_call(
        _fused_rollout_kernel,
        out_shape=jax.ShapeDtypeStruct((t_steps, b_pad, n_pad), jnp.float32),
        grid=grid,
        in_specs=[
            pl.BlockSpec((1, bb, k_pad), lambda i, t: (t, i, 0)),
            pl.BlockSpec((bb, n_pad), lambda i, t: (i, 0)),
            pl.BlockSpec((k_pad, n_pad), lambda i, t: (0, 0)),   # resident
            pl.BlockSpec((n_pad, n_pad), lambda i, t: (0, 0)),   # resident
            pl.BlockSpec((n_pad, n_pad), lambda i, t: (0, 0)),   # resident
        ],
        out_specs=pl.BlockSpec((1, bb, n_pad), lambda i, t: (t, i, 0)),
        scratch_shapes=[pltpu.VMEM((bb, n_pad), jnp.float32)],   # memory carry
        compiler_params=pltpu.CompilerParams(
            dimension_semantics=("parallel", "arbitrary")),
        cost_estimate=pl.CostEstimate(
            flops=flops, transcendentals=transcendentals,
            bytes_accessed=bytes_accessed),
    )(x, m0, w1, whf, w2)

    actions = slab[:, :batch, hid:hid + act]
    mem_out = slab[t_steps - 1, :batch, :hid]
    return actions, mem_out


def fused_policy_step(obs, mem, w1, whf, w2, *, obs_dim, hid, act):
    """Single step == T=1 rollout (same kernel, same residency benefits)."""
    actions, mem_out = fused_policy_rollout(
        obs[None], mem, w1, whf, w2, obs_dim=obs_dim, hid=hid, act=act)
    return actions[0], mem_out


# ----------------------------------------------------------------------------
# Nested-dict utilities (flatten_nested / get_schema / reconstruct_nested).
# ----------------------------------------------------------------------------
def flatten_nested(d, prefix=""):
    out = {}
    for k, v in d.items():
        key = f"{prefix}{k}"
        if isinstance(v, dict):
            out.update(flatten_nested(v, key + "."))
        else:
            out[key] = v
    return out


def get_schema(d):
    return {k: (get_schema(v) if isinstance(v, dict) else None) for k, v in d.items()}


def reconstruct_nested(flat, schema, prefix=""):
    out = {}
    for k, sub in schema.items():
        key = f"{prefix}{k}"
        if sub is None:
            out[k] = flat[key]
        else:
            out[k] = reconstruct_nested(flat, sub, key + ".")
    return out


# ----------------------------------------------------------------------------
# GraphBuilder / StatelessWrapper (JAX equivalents of the nn.Module wrappers)
# ----------------------------------------------------------------------------
class GraphBuilder:
    """Minimal functional equivalent of the PyTorch GraphBuilder: submodules
    registered via add_module_to_graph run as pre-hooks injecting their named
    outputs into kwargs; forward returns outputs in output_names order."""

    def __init__(self, graph_name, output_names=()):
        self.graph_name = graph_name
        self.output_names = list(output_names)
        self._hooks = []

    def add_module_to_graph(self, module, module_name, input_names, output_names):
        if isinstance(output_names, str):
            output_names = (output_names,)
        if not isinstance(input_names, dict):
            input_names = {name: name for name in input_names}

        def hook(kwargs):
            inputs = {inp: kwargs[arg] for inp, arg in input_names.items()}
            outputs = module(**inputs)
            if not isinstance(outputs, tuple):
                outputs = (outputs,)
            kwargs.update(
                {n: o for n, o in zip(output_names, outputs) if o is not None}
            )
            return kwargs

        self._hooks.append(hook)
        for name in output_names:
            if name not in self.output_names:
                self.output_names.append(name)

    def __call__(self, **kwargs):
        for hook in self._hooks:
            kwargs = hook(kwargs)
        return tuple(kwargs[name] for name in self.output_names)


class StatelessWrapper:
    """JAX equivalent of the PyTorch StatelessWrapper: flat dict in -> flat
    dict out, with nested reconstruction according to the example-input schema."""

    def __init__(self, module, example_inputs, output_names):
        self.module = module
        self.input_schema = get_schema(example_inputs)
        self.output_names = list(output_names)

    def __call__(self, inputs):
        nested = reconstruct_nested(inputs, self.input_schema)
        outputs = self.module(**nested)
        return flatten_nested(dict(zip(self.output_names, outputs)))


class RecurrentPolicy:
    """The synthetic module registered onto the GraphBuilder; its compute runs
    inside the fused Pallas rollout kernel.  Weight packing happens once."""

    def __init__(self, wx, wh, bh, wa, ba):
        (self.w1, self.whf, self.w2,
         self.obs_dim, self.hid, self.act) = pack_policy_params(wx, wh, bh, wa, ba)

    def __call__(self, observation, memory_in):
        x = observation["state"]  # nested input, exercising the schema path
        action, memory_out = fused_policy_step(
            x, memory_in, self.w1, self.whf, self.w2,
            obs_dim=self.obs_dim, hid=self.hid, act=self.act,
        )
        return action, memory_out


# ----------------------------------------------------------------------------
# Main
# ----------------------------------------------------------------------------
if __name__ == "__main__":
    B, OBS, HID, ACT, T = 4, 16, 32, 8, 8

    key = jax.random.PRNGKey(0)
    kx, kh, kbh, ka, kba, kobs, kmem, kseq = jax.random.split(key, 8)

    # Deterministic parameter init ([in, out] layout, biases [1, out]).
    wx = jax.random.normal(kx, (OBS, HID), jnp.float32) * 0.1
    wh = jax.random.normal(kh, (HID, HID), jnp.float32) * 0.1
    bh = jax.random.normal(kbh, (1, HID), jnp.float32) * 0.1
    wa = jax.random.normal(ka, (HID, ACT), jnp.float32) * 0.1
    ba = jax.random.normal(kba, (1, ACT), jnp.float32) * 0.1

    # Example (nested) inputs: observation.state plus a memory_in state tensor.
    example_inputs = {
        "observation": {"state": jax.random.normal(kobs, (B, OBS), jnp.float32)},
        "memory_in": jax.random.normal(kmem, (B, HID), jnp.float32),
    }

    # Build the graph and wrap it (StatelessWrapper forward semantics).
    policy = RecurrentPolicy(wx, wh, bh, wa, ba)
    graph = GraphBuilder("policy_graph")
    graph.add_module_to_graph(
        policy,
        module_name="policy",
        input_names=("observation", "memory_in"),
        output_names=("action", "memory_out"),
    )
    stateless = StatelessWrapper(graph, example_inputs, graph.output_names)

    # --- single-step path (what StatelessWrapper.forward does) -------------
    flat_inputs = flatten_nested(example_inputs)
    outputs = stateless(flat_inputs)
    outputs = jax.tree_util.tree_map(jax.block_until_ready, outputs)

    x0 = flat_inputs["observation.state"]
    m0 = flat_inputs["memory_in"]
    h_ref = jnp.tanh(x0 @ wx + m0 @ wh + bh)
    a_ref = jnp.tanh(h_ref @ wa + ba)
    assert set(outputs.keys()) == {"action", "memory_out"}
    assert outputs["action"].shape == (B, ACT)
    assert outputs["memory_out"].shape == (B, HID)
    assert jnp.allclose(outputs["action"], a_ref, atol=1e-5)
    assert jnp.allclose(outputs["memory_out"], h_ref, atol=1e-5)

    # --- multi-step rollout: the whole time loop in ONE pallas_call --------
    obs_seq = jax.random.normal(kseq, (T, B, OBS), jnp.float32)
    actions, mem_out = fused_policy_rollout(
        obs_seq, m0, policy.w1, policy.whf, policy.w2,
        obs_dim=policy.obs_dim, hid=policy.hid, act=policy.act)
    actions = jax.block_until_ready(actions)
    mem_out = jax.block_until_ready(mem_out)
    assert actions.shape == (T, B, ACT)
    assert mem_out.shape == (B, HID)

    m_ref = m0
    for t in range(T):
        h_t = jnp.tanh(obs_seq[t] @ wx + m_ref @ wh + bh)
        a_t = jnp.tanh(h_t @ wa + ba)
        assert jnp.allclose(actions[t], a_t, atol=1e-5), f"step {t} mismatch"
        m_ref = h_t
    assert jnp.allclose(mem_out, m_ref, atol=1e-5)

    print("KERNEL_OK")
</pallas_src>

<mosaic_0001>
module attributes {stable_mosaic.version = 11 : i64} {
  func.func @_fused_rollout_kernel(%arg0: i32, %arg1: i32, %arg2: memref<1x8x128xf32, #tpu.memory_space<vmem>>, %arg3: memref<8x128xf32, #tpu.memory_space<vmem>>, %arg4: memref<128x128xf32, #tpu.memory_space<vmem>>, %arg5: memref<128x128xf32, #tpu.memory_space<vmem>>, %arg6: memref<128x128xf32, #tpu.memory_space<vmem>>, %arg7: memref<1x8x128xf32, #tpu.memory_space<vmem>>, %arg8: memref<8x128xf32, #tpu.memory_space<vmem>>) attributes {dimension_semantics = [#tpu.dimension_semantics<parallel>, #tpu.dimension_semantics<arbitrary>], iteration_bounds = array<i64: 1, 1>, scalar_prefetch = 0 : i64, scratch_operands = 1 : i64, tpu.core_type = #tpu.core_type<tc>, window_params = [{transform_indices = @transform_0, window_bounds = array<i64: 1, 8, 128>}, {transform_indices = @transform_1, window_bounds = array<i64: 8, 128>}, {pipeline_mode = #tpu.pipeline_mode<synchronous>, transform_indices = @transform_2, window_bounds = array<i64: 128, 128>}, {pipeline_mode = #tpu.pipeline_mode<synchronous>, transform_indices = @transform_3, window_bounds = array<i64: 128, 128>}, {pipeline_mode = #tpu.pipeline_mode<synchronous>, transform_indices = @transform_4, window_bounds = array<i64: 128, 128>}, {transform_indices = @transform_5, window_bounds = array<i64: 1, 8, 128>}]} {
    %c0_i32 = arith.constant 0 : i32
    %0 = arith.cmpi eq, %arg1, %c0_i32 : i32
    %1 = arith.extui %0 : i1 to i32
    %c0_i32_0 = arith.constant 0 : i32
    %2 = arith.cmpi ne, %1, %c0_i32_0 : i32
    scf.if %2 {
      %c0_18 = arith.constant 0 : index
      %c0_19 = arith.constant 0 : index
      %20 = vector.load %arg3[%c0_18, %c0_19] : memref<8x128xf32, #tpu.memory_space<vmem>>, vector<8x128xf32>
      %c0_20 = arith.constant 0 : index
      %c0_21 = arith.constant 0 : index
      %21 = vector.load %arg8[%c0_20, %c0_21] : memref<8x128xf32, #tpu.memory_space<vmem>>, vector<8x128xf32>
      tpu.vector_store %arg8[%c0_20, %c0_21], %20 {strides = array<i32>} : memref<8x128xf32, #tpu.memory_space<vmem>>, vector<8x128xf32>,
    } else {
    }
    %c0 = arith.constant 0 : index
    %c0_1 = arith.constant 0 : index
    %c0_2 = arith.constant 0 : index
    %3 = vector.load %arg2[%c0, %c0_1, %c0_2] : memref<1x8x128xf32, #tpu.memory_space<vmem>>, vector<1x8x128xf32>
    %4 = vector.shape_cast %3 : vector<1x8x128xf32> to vector<8x128xf32>
    %c0_3 = arith.constant 0 : index
    %c0_4 = arith.constant 0 : index
    %5 = vector.load %arg4[%c0_3, %c0_4] : memref<128x128xf32, #tpu.memory_space<vmem>>, vector<128x128xf32>
    %cst = arith.constant dense<0.000000e+00> : vector<8x128xf32>
    %6 = tpu.matmul %4, %5, %cst {dimension_numbers = #tpu.dot_dimension_numbers<[1], [0], [0], [1], [0, 0, 1, 1], [], []>} : vector<8x128xf32>, vector<128x128xf32>, vector<8x128xf32> -> vector<8x128xf32>
    %c0_5 = arith.constant 0 : index
    %c0_6 = arith.constant 0 : index
    %7 = vector.load %arg8[%c0_5, %c0_6] : memref<8x128xf32, #tpu.memory_space<vmem>>, vector<8x128xf32>
    %c0_7 = arith.constant 0 : index
    %c0_8 = arith.constant 0 : index
    %8 = vector.load %arg5[%c0_7, %c0_8] : memref<128x128xf32, #tpu.memory_space<vmem>>, vector<128x128xf32>
    %cst_9 = arith.constant dense<0.000000e+00> : vector<8x128xf32>
    %9 = tpu.matmul %7, %8, %cst_9 {dimension_numbers = #tpu.dot_dimension_numbers<[1], [0], [0], [1], [0, 0, 1, 1], [], []>} : vector<8x128xf32>, vector<128x128xf32>, vector<8x128xf32> -> vector<8x128xf32>
    %10 = arith.addf %6, %9 : vector<8x128xf32>
    %11 = math.tanh %10 : vector<8x128xf32>
    %c0_10 = arith.constant 0 : index
    %c0_11 = arith.constant 0 : index
    %12 = vector.load %arg6[%c0_10, %c0_11] : memref<128x128xf32, #tpu.memory_space<vmem>>, vector<128x128xf32>
    %cst_12 = arith.constant dense<0.000000e+00> : vector<8x128xf32>
    %13 = tpu.matmul %11, %12, %cst_12 {dimension_numbers = #tpu.dot_dimension_numbers<[1], [0], [0], [1], [0, 0, 1, 1], [], []>} : vector<8x128xf32>, vector<128x128xf32>, vector<8x128xf32> -> vector<8x128xf32>
    %14 = math.tanh %13 : vector<8x128xf32>
    %15 = arith.addf %11, %14 : vector<8x128xf32>
    %c0_13 = arith.constant 0 : index
    %c0_14 = arith.constant 0 : index
    %16 = vector.load %arg8[%c0_13, %c0_14] : memref<8x128xf32, #tpu.memory_space<vmem>>, vector<8x128xf32>
    tpu.vector_store %arg8[%c0_13, %c0_14], %15 {strides = array<i32>} : memref<8x128xf32, #tpu.memory_space<vmem>>, vector<8x128xf32>,
    %c0_15 = arith.constant 0 : index
    %c0_16 = arith.constant 0 : index
    %c0_17 = arith.constant 0 : index
    %17 = vector.load %arg7[%c0_15, %c0_16, %c0_17] : memref<1x8x128xf32, #tpu.memory_space<vmem>>, vector<1x8x128xf32>
    %18 = vector.shape_cast %17 : vector<1x8x128xf32> to vector<8x128xf32>
    %19 = vector.shape_cast %15 : vector<8x128xf32> to vector<1x8x128xf32>
    tpu.vector_store %arg7[%c0_15, %c0_16, %c0_17], %19 {strides = array<i32>} : memref<1x8x128xf32, #tpu.memory_space<vmem>>, vector<1x8x128xf32>,
    return
  }
  func.func @transform_0(%arg0: i32, %arg1: i32) -> (i32, i32, i32) {
    %c0_i32 = arith.constant 0 : i32
    %c0_i32_0 = arith.constant 0 : i32
    return %arg1, %arg0, %c0_i32 : i32, i32, i32
  }
  func.func @transform_1(%arg0: i32, %arg1: i32) -> (i32, i32) {
    %c0_i32 = arith.constant 0 : i32
    %c0_i32_0 = arith.constant 0 : i32
    return %arg0, %c0_i32 : i32, i32
  }
  func.func @transform_2(%arg0: i32, %arg1: i32) -> (i32, i32) {
    %c0_i32 = arith.constant 0 : i32
    %c0_i32_0 = arith.constant 0 : i32
    %c0_i32_1 = arith.constant 0 : i32
    return %c0_i32, %c0_i32_0 : i32, i32
  }
  func.func @transform_3(%arg0: i32, %arg1: i32) -> (i32, i32) {
    %c0_i32 = arith.constant 0 : i32
    %c0_i32_0 = arith.constant 0 : i32
    %c0_i32_1 = arith.constant 0 : i32
    return %c0_i32, %c0_i32_0 : i32, i32
  }
  func.func @transform_4(%arg0: i32, %arg1: i32) -> (i32, i32) {
    %c0_i32 = arith.constant 0 : i32
    %c0_i32_0 = arith.constant 0 : i32
    %c0_i32_1 = arith.constant 0 : i32
    return %c0_i32, %c0_i32_0 : i32, i32
  }
  func.func @transform_5(%arg0: i32, %arg1: i32) -> (i32, i32, i32) {
    %c0_i32 = arith.constant 0 : i32
    %c0_i32_0 = arith.constant 0 : i32
    return %arg1, %arg0, %c0_i32 : i32, i32, i32
  }
}

</mosaic_0001>

<llo_original>
// kernel: fused_policy_rollout.1
$region0: #{fused_policy_rollout.1}
  #allocation0 [shape = 'u32[]', space=smem, size = 0x4, offset = 0x4, fixed_abs, tag = 'smem constant byte address 0x4 - core index']
  #allocation1 [shape = 'u32[144,128]{1,0:T(1,128)}', space=vmem, size = 0x12000, scoped, tag = 'internal scratch']
  #allocation2 [shape = 'f32[8,128]{1,0:T(8,128)}', space=vmem, size = 0x1000, scoped, tag = 'scratch operand']
  %s0 = inlined_call_operand.vmem [shape: f32[1,8,128], index: 0, kind: input, shape index: {}]
  %s1 = inlined_call_operand.vmem [shape: f32[8,128], index: 1, kind: input, shape index: {}]
  %s2 = inlined_call_operand.hbm [shape: f32[128,128], index: 2, kind: input, shape index: {}]
  %s3 = inlined_call_operand.hbm [shape: f32[128,128], index: 3, kind: input, shape index: {}]
  %s4 = inlined_call_operand.hbm [shape: f32[128,128], index: 4, kind: input, shape index: {}]
  %s5 = inlined_call_operand.vmem [shape: f32[1,8,128], index: 5, kind: output, shape index: {}]
  %s6 = sld [smem:[#allocation0]]
  $region46: #{fused_policy_rollout.1} parent=0
    _
  %s8 = ssub.s32 1, %s6
  %s9 = scalar_select 0, %s8, %s6
  $region1: #{fused_policy_rollout.1} parent=0
    #allocation3 [shape = 'u8[65536]{0}', space=vmem, size = 0x10000, scoped, tag = 'input window, operand 2, single buffered']
    #allocation4 [shape = 's32[1]{0}', space=sflag, size = 0x4, scoped, tag = 'scoped memory for fused_policy_rollout.1']
    #allocation5 [shape = 'u8[65536]{0}', space=vmem, size = 0x10000, scoped, tag = 'input window, operand 3, single buffered']
    #allocation6 [shape = 's32[1]{0}', space=sflag, size = 0x4, scoped, tag = 'scoped memory for fused_policy_rollout.1']
    #allocation7 [shape = 'u8[65536]{0}', space=vmem, size = 0x10000, scoped, tag = 'input window, operand 4, single buffered']
    %10 = vsyncpa [#allocation4], 0
    %11 = vsyncpa [#allocation6], 0
    // Predicated region
    $region2: #{fused_policy_rollout.1} parent=1 // pred_check
      _
    $region3: #{fused_policy_rollout.1} parent=1 // pred_check_branch
      %13 = sbr.rel (0) target = $region5
    $region4: #{fused_policy_rollout.1} parent=1 // pred_region
      _
    $region5: #{fused_policy_rollout.1} parent=1 // pred_fallthru
      _
    // Predicated region
    $region6: #{fused_policy_rollout.1} parent=1 // pred_check
      _
    $region7: #{fused_policy_rollout.1} parent=1 // pred_check_branch
      %15 = sbr.rel (0) target = $region9
    $region8: #{fused_policy_rollout.1} parent=1 // pred_region
      _
    $region9: #{fused_policy_rollout.1} parent=1 // pred_fallthru
      _
    // Predicated region
    $region10: #{fused_policy_rollout.1} parent=1 // pred_check
      _
    $region11: #{fused_policy_rollout.1} parent=1 // pred_check_branch
      %17 = sbr.rel (0) target = $region13
    $region12: #{fused_policy_rollout.1} parent=1 // pred_region
      %s19 = ssub.s32 2048, 2048
      %20 = vsyncadd [#allocation4], %s19
      %s21 = sshll.u32 [#allocation3], 4
      %s22 = int_to_ptr.vmem [resolvable:$true] %s21
      %27 = dma.hbm_to_vmem [thread:$0]  %s2, 2048, %s22, [#allocation4], 128, 128, 8
    $region13: #{fused_policy_rollout.1} parent=1 // pred_fallthru
      _
    // Predicated region
    $region14: #{fused_policy_rollout.1} parent=1 // pred_check
      _
    $region15: #{fused_policy_rollout.1} parent=1 // pred_check_branch
      %29 = sbr.rel (0) target = $region17
    $region16: #{fused_policy_rollout.1} parent=1 // pred_region
      %s31 = ssub.s32 2048, 2048
      %32 = vsyncadd [#allocation6], %s31
      %s33 = sshll.u32 [#allocation5], 4
      %s34 = int_to_ptr.vmem [resolvable:$true] %s33
      %39 = dma.hbm_to_vmem [thread:$0]  %s3, 2048, %s34, [#allocation6], 128, 128, 8
    $region17: #{fused_policy_rollout.1} parent=1 // pred_fallthru
      _
    // Predicated region
    $region18: #{fused_policy_rollout.1} parent=1 // pred_check
      _
    $region19: #{fused_policy_rollout.1} parent=1 // pred_check_branch
      %41 = sbr.rel (0) target = $region21
    $region20: #{fused_policy_rollout.1} parent=1 // pred_region
      %s43 = ssub.s32 2048, 2048
      %44 = vsyncadd [#allocation6], %s43
      %s45 = sshll.u32 [#allocation7], 4
      %s46 = int_to_ptr.vmem [resolvable:$true] %s45
      %51 = dma.hbm_to_vmem [thread:$0]  %s4, 2048, %s46, [#allocation6], 128, 128, 8
    $region21: #{fused_policy_rollout.1} parent=1 // pred_fallthru
      _
    // Predicated region
    $region22: #{fused_policy_rollout.1} parent=1 // pred_check
      _
    $region23: #{fused_policy_rollout.1} parent=1 // pred_check_branch
      %53 = sbr.rel (0) target = $region25
    $region24: #{fused_policy_rollout.1} parent=1 // pred_region
      %54 = dma.done [#allocation4], 2048
    $region25: #{fused_policy_rollout.1} parent=1 // pred_fallthru
      _
    // Predicated region
    $region26: #{fused_policy_rollout.1} parent=1 // pred_check
      _
    $region27: #{fused_policy_rollout.1} parent=1 // pred_check_branch
      %56 = sbr.rel (0) target = $region29
    $region28: #{fused_policy_rollout.1} parent=1 // pred_region
      %57 = dma.done [#allocation6], 2048
    $region29: #{fused_policy_rollout.1} parent=1 // pred_fallthru
      _
    // Predicated region
    $region30: #{fused_policy_rollout.1} parent=1 // pred_check
      _
    $region31: #{fused_policy_rollout.1} parent=1 // pred_check_branch
      %59 = sbr.rel (0) target = $region33
    $region32: #{fused_policy_rollout.1} parent=1 // pred_region
      %60 = dma.done [#allocation6], 2048
    $region33: #{fused_policy_rollout.1} parent=1 // pred_fallthru
      _
    %p61 = scmp.eq.s32.totalorder 0, 0
    // Predicated region
    $region34: #{fused_policy_rollout.1} parent=1 // pred_check
      %p62 = pneg %p61
    $region35: #{fused_policy_rollout.1} parent=1 // pred_check_branch
      %64 = sbr.rel (%p62) target = $region37
    $region36: #{fused_policy_rollout.1} parent=1 // pred_region
      %v65 = vld [vmem:[%s1] sm:$0xff]
      %66 = vst [vmem:[#allocation2] sm:$0xff] %v65
    $region37: #{fused_policy_rollout.1} parent=1 // pred_fallthru
      _
    %v67 = vld [vmem:[%s0] sm:$0xff]
    %v68 = vld [vmem:[#allocation3] sm:$0xff]
    %v69 = vld [vmem:[#allocation3 + $0x8] sm:$0xff]
    %v70 = vld [vmem:[#allocation3 + $0x10] sm:$0xff]
    %v71 = vld [vmem:[#allocation3 + $0x18] sm:$0xff]
    %v72 = vld [vmem:[#allocation3 + $0x20] sm:$0xff]
    %v73 = vld [vmem:[#allocation3 + $0x28] sm:$0xff]
    %v74 = vld [vmem:[#allocation3 + $0x30] sm:$0xff]
    %v75 = vld [vmem:[#allocation3 + $0x38] sm:$0xff]
    %v76 = vld [vmem:[#allocation3 + $0x40] sm:$0xff]
    %v77 = vld [vmem:[#allocation3 + $0x48] sm:$0xff]
    %v78 = vld [vmem:[#allocation3 + $0x50] sm:$0xff]
    %v79 = vld [vmem:[#allocation3 + $0x58] sm:$0xff]
    %v80 = vld [vmem:[#allocation3 + $0x60] sm:$0xff]
    %v81 = vld [vmem:[#allocation3 + $0x68] sm:$0xff]
    %v82 = vld [vmem:[#allocation3 + $0x70] sm:$0xff]
    %v83 = vld [vmem:[#allocation3 + $0x78] sm:$0xff]
    %v84 = vld [vmem:[#allocation2] sm:$0xff]
    %v85 = vld [vmem:[#allocation5] sm:$0xff]
    %v86 = vld [vmem:[#allocation5 + $0x8] sm:$0xff]
    %v87 = vld [vmem:[#allocation5 + $0x10] sm:$0xff]
    %v88 = vld [vmem:[#allocation5 + $0x18] sm:$0xff]
    %v89 = vld [vmem:[#allocation5 + $0x20] sm:$0xff]
    %v90 = vld [vmem:[#allocation5 + $0x28] sm:$0xff]
    %v91 = vld [vmem:[#allocation5 + $0x30] sm:$0xff]
    %v92 = vld [vmem:[#allocation5 + $0x38] sm:$0xff]
    %v93 = vld [vmem:[#allocation5 + $0x40] sm:$0xff]
    %v94 = vld [vmem:[#allocation5 + $0x48] sm:$0xff]
    %v95 = vld [vmem:[#allocation5 + $0x50] sm:$0xff]
    %v96 = vld [vmem:[#allocation5 + $0x58] sm:$0xff]
    %v97 = vld [vmem:[#allocation5 + $0x60] sm:$0xff]
    %v98 = vld [vmem:[#allocation5 + $0x68] sm:$0xff]
    %v99 = vld [vmem:[#allocation5 + $0x70] sm:$0xff]
    %v100 = vld [vmem:[#allocation5 + $0x78] sm:$0xff]
    %101 = vmatprep.subr.mxu0 0.0
    %102 = vmatpush1.msra.mxu0 %v85
    %103 = vmatprep.subr.mxu0 0.0
    %104 = vmatpush1.msra.mxu0 %v86
    %105 = vmatprep.subr.mxu0 0.0
    %106 = vmatpush1.msra.mxu0 %v87
    %107 = vmatprep.subr.mxu0 0.0
    %108 = vmatpush1.msra.mxu0 %v88
    %109 = vmatprep.subr.mxu0 0.0
    %110 = vmatpush1.msra.mxu0 %v89
    %111 = vmatprep.subr.mxu0 0.0
    %112 = vmatpush1.msra.mxu0 %v90
    %113 = vmatprep.subr.mxu0 0.0
    %114 = vmatpush1.msra.mxu0 %v91
    %115 = vmatprep.subr.mxu0 0.0
    %116 = vmatpush1.msra.mxu0 %v92
    %117 = vmatprep.subr.mxu0 0.0
    %118 = vmatpush1.msra.mxu0 %v93
    %119 = vmatprep.subr.mxu0 0.0
    %120 = vmatpush1.msra.mxu0 %v94
    %121 = vmatprep.subr.mxu0 0.0
    %122 = vmatpush1.msra.mxu0 %v95
    %123 = vmatprep.subr.mxu0 0.0
    %124 = vmatpush1.msra.mxu0 %v96
    %125 = vmatprep.subr.mxu0 0.0
    %126 = vmatpush1.msra.mxu0 %v97
    %127 = vmatprep.subr.mxu0 0.0
    %128 = vmatpush1.msra.mxu0 %v98
    %129 = vmatprep.subr.mxu0 0.0
    %130 = vmatpush1.msra.mxu0 %v99
    %131 = vmatprep.subr.mxu0 0.0
    %132 = vmatpush1.msra.mxu0 %v100
    %133 = vmatprep.subr.mxu0 0.0
    %134 = vmatpush1.msra.mxu0 0.0
    %135 = vmatprep.subr.mxu0 0.0
    %136 = vmatpush1.msra.mxu0 0.0
    %137 = vmatprep.subr.mxu0 0.0
    %138 = vmatpush1.msra.mxu0 0.0
    %139 = vmatprep.subr.mxu0 0.0
    %140 = vmatpush1.msra.mxu0 0.0
    %141 = vmatprep.subr.mxu0 0.0
    %142 = vmatpush1.msra.mxu0 0.0
    %143 = vmatprep.subr.mxu0 0.0
    %144 = vmatpush1.msra.mxu0 0.0
    %145 = vmatprep.subr.mxu0 0.0
    %146 = vmatpush1.msra.mxu0 0.0
    %147 = vmatprep.subr.mxu0 0.0
    %148 = vmatpush1.msra.mxu0 0.0
    %149 = vmatprep.subr.mxu0 0.0
    %150 = vmatpush1.msra.mxu0 0.0
    %151 = vmatprep.subr.mxu0 0.0
    %152 = vmatpush1.msra.mxu0 0.0
    %153 = vmatprep.subr.mxu0 0.0
    %154 = vmatpush1.msra.mxu0 0.0
    %155 = vmatprep.subr.mxu0 0.0
    %156 = vmatpush1.msra.mxu0 0.0
    %157 = vmatprep.subr.mxu0 0.0
    %158 = vmatpush1.msra.mxu0 0.0
    %159 = vmatprep.subr.mxu0 0.0
    %160 = vmatpush1.msra.mxu0 0.0
    %161 = vmatprep.subr.mxu0 0.0
    %162 = vmatpush1.msra.mxu0 0.0
    %163 = vmatprep.subr.mxu0 0.0
    %164 = vmatpush1.msra.mxu0 0.0
    %165 = vmatprep.mubr.f32.mxu0 0.0
    %166 = vmatmul.mubr.f32.gmra.mrb[0].mxu0 %v84
    %v167 = vpop.f32.mrb[0].mxu0
    %v168 = vadd.f32 0.0, %v167
    %v169 = vpop.f32.mrb[0].mxu0
    %170 = vdwg.mxu0
    %171 = vmatprep.subr.mxu0 0.0
    %172 = vmatpush1.msra.mxu0 %v68
    %173 = vmatprep.subr.mxu0 0.0
    %174 = vmatpush1.msra.mxu0 %v69
    %175 = vmatprep.subr.mxu0 0.0
    %176 = vmatpush1.msra.mxu0 %v70
    %177 = vmatprep.subr.mxu0 0.0
    %178 = vmatpush1.msra.mxu0 %v71
    %179 = vmatprep.subr.mxu0 0.0
    %180 = vmatpush1.msra.mxu0 %v72
    %181 = vmatprep.subr.mxu0 0.0
    %182 = vmatpush1.msra.mxu0 %v73
    %183 = vmatprep.subr.mxu0 0.0
    %184 = vmatpush1.msra.mxu0 %v74
    %185 = vmatprep.subr.mxu0 0.0
    %186 = vmatpush1.msra.mxu0 %v75
    %187 = vmatprep.subr.mxu0 0.0
    %188 = vmatpush1.msra.mxu0 %v76
    %189 = vmatprep.subr.mxu0 0.0
    %190 = vmatpush1.msra.mxu0 %v77
    %191 = vmatprep.subr.mxu0 0.0
    %192 = vmatpush1.msra.mxu0 %v78
    %193 = vmatprep.subr.mxu0 0.0
    %194 = vmatpush1.msra.mxu0 %v79
    %195 = vmatprep.subr.mxu0 0.0
    %196 = vmatpush1.msra.mxu0 %v80
    %197 = vmatprep.subr.mxu0 0.0
    %198 = vmatpush1.msra.mxu0 %v81
    %199 = vmatprep.subr.mxu0 0.0
    %200 = vmatpush1.msra.mxu0 %v82
    %201 = vmatprep.subr.mxu0 0.0
    %202 = vmatpush1.msra.mxu0 %v83
    %203 = vmatprep.subr.mxu0 0.0
    %204 = vmatpush1.msra.mxu0 0.0
    %205 = vmatprep.subr.mxu0 0.0
    %206 = vmatpush1.msra.mxu0 0.0
    %207 = vmatprep.subr.mxu0 0.0
    %208 = vmatpush1.msra.mxu0 0.0
    %209 = vmatprep.subr.mxu0 0.0
    %210 = vmatpush1.msra.mxu0 0.0
    %211 = vmatprep.subr.mxu0 0.0
    %212 = vmatpush1.msra.mxu0 0.0
    %213 = vmatprep.subr.mxu0 0.0
    %214 = vmatpush1.msra.mxu0 0.0
    %215 = vmatprep.subr.mxu0 0.0
    %216 = vmatpush1.msra.mxu0 0.0
    %217 = vmatprep.subr.mxu0 0.0
    %218 = vmatpush1.msra.mxu0 0.0
    %219 = vmatprep.subr.mxu0 0.0
    %220 = vmatpush1.msra.mxu0 0.0
    %221 = vmatprep.subr.mxu0 0.0
    %222 = vmatpush1.msra.mxu0 0.0
    %223 = vmatprep.subr.mxu0 0.0
    %224 = vmatpush1.msra.mxu0 0.0
    %225 = vmatprep.subr.mxu0 0.0
    %226 = vmatpush1.msra.mxu0 0.0
    %227 = vmatprep.subr.mxu0 0.0
    %228 = vmatpush1.msra.mxu0 0.0
    %229 = vmatprep.subr.mxu0 0.0
    %230 = vmatpush1.msra.mxu0 0.0
    %231 = vmatprep.subr.mxu0 0.0
    %232 = vmatpush1.msra.mxu0 0.0
    %233 = vmatprep.subr.mxu0 0.0
    %234 = vmatpush1.msra.mxu0 0.0
    %235 = vmatprep.mubr.f32.mxu0 0.0
    %236 = vmatmul.mubr.f32.gmra.mrb[0].mxu0 %v67
    %v237 = vpop.f32.mrb[0].mxu0
    %v238 = vadd.f32 %v168, %v237
    %v239 = vpop.f32.mrb[0].mxu0
    %240 = vdwg.mxu0
    %v241 = vtanh.pop %v238
    %v242 = vld [vmem:[#allocation7] sm:$0xff]
    %v243 = vld [vmem:[#allocation7 + $0x8] sm:$0xff]
    %v244 = vld [vmem:[#allocation7 + $0x10] sm:$0xff]
    %v245 = vld [vmem:[#allocation7 + $0x18] sm:$0xff]
    %v246 = vld [vmem:[#allocation7 + $0x20] sm:$0xff]
    %v247 = vld [vmem:[#allocation7 + $0x28] sm:$0xff]
    %v248 = vld [vmem:[#allocation7 + $0x30] sm:$0xff]
    %v249 = vld [vmem:[#allocation7 + $0x38] sm:$0xff]
    %v250 = vld [vmem:[#allocation7 + $0x40] sm:$0xff]
    %v251 = vld [vmem:[#allocation7 + $0x48] sm:$0xff]
    %v252 = vld [vmem:[#allocation7 + $0x50] sm:$0xff]
    %v253 = vld [vmem:[#allocation7 + $0x58] sm:$0xff]
    %v254 = vld [vmem:[#allocation7 + $0x60] sm:$0xff]
    %v255 = vld [vmem:[#allocation7 + $0x68] sm:$0xff]
    %v256 = vld [vmem:[#allocation7 + $0x70] sm:$0xff]
    %v257 = vld [vmem:[#allocation7 + $0x78] sm:$0xff]
    %258 = vmatprep.subr.mxu0 0.0
    %259 = vmatpush1.msra.mxu0 %v242
    %260 = vmatprep.subr.mxu0 0.0
    %261 = vmatpush1.msra.mxu0 %v243
    %262 = vmatprep.subr.mxu0 0.0
    %263 = vmatpush1.msra.mxu0 %v244
    %264 = vmatprep.subr.mxu0 0.0
    %265 = vmatpush1.msra.mxu0 %v245
    %266 = vmatprep.subr.mxu0 0.0
    %267 = vmatpush1.msra.mxu0 %v246
    %268 = vmatprep.subr.mxu0 0.0
    %269 = vmatpush1.msra.mxu0 %v247
    %270 = vmatprep.subr.mxu0 0.0
    %271 = vmatpush1.msra.mxu0 %v248
    %272 = vmatprep.subr.mxu0 0.0
    %273 = vmatpush1.msra.mxu0 %v249
    %274 = vmatprep.subr.mxu0 0.0
    %275 = vmatpush1.msra.mxu0 %v250
    %276 = vmatprep.subr.mxu0 0.0
    %277 = vmatpush1.msra.mxu0 %v251
    %278 = vmatprep.subr.mxu0 0.0
    %279 = vmatpush1.msra.mxu0 %v252
    %280 = vmatprep.subr.mxu0 0.0
    %281 = vmatpush1.msra.mxu0 %v253
    %282 = vmatprep.subr.mxu0 0.0
    %283 = vmatpush1.msra.mxu0 %v254
    %284 = vmatprep.subr.mxu0 0.0
    %285 = vmatpush1.msra.mxu0 %v255
    %286 = vmatprep.subr.mxu0 0.0
    %287 = vmatpush1.msra.mxu0 %v256
    %288 = vmatprep.subr.mxu0 0.0
    %289 = vmatpush1.msra.mxu0 %v257
    %290 = vmatprep.subr.mxu0 0.0
    %291 = vmatpush1.msra.mxu0 0.0
    %292 = vmatprep.subr.mxu0 0.0
    %293 = vmatpush1.msra.mxu0 0.0
    %294 = vmatprep.subr.mxu0 0.0
    %295 = vmatpush1.msra.mxu0 0.0
    %296 = vmatprep.subr.mxu0 0.0
    %297 = vmatpush1.msra.mxu0 0.0
    %298 = vmatprep.subr.mxu0 0.0
    %299 = vmatpush1.msra.mxu0 0.0
    %300 = vmatprep.subr.mxu0 0.0
    %301 = vmatpush1.msra.mxu0 0.0
    %302 = vmatprep.subr.mxu0 0.0
    %303 = vmatpush1.msra.mxu0 0.0
    %304 = vmatprep.subr.mxu0 0.0
    %305 = vmatpush1.msra.mxu0 0.0
    %306 = vmatprep.subr.mxu0 0.0
    %307 = vmatpush1.msra.mxu0 0.0
    %308 = vmatprep.subr.mxu0 0.0
    %309 = vmatpush1.msra.mxu0 0.0
    %310 = vmatprep.subr.mxu0 0.0
    %311 = vmatpush1.msra.mxu0 0.0
    %312 = vmatprep.subr.mxu0 0.0
    %313 = vmatpush1.msra.mxu0 0.0
    %314 = vmatprep.subr.mxu0 0.0
    %315 = vmatpush1.msra.mxu0 0.0
    %316 = vmatprep.subr.mxu0 0.0
    %317 = vmatpush1.msra.mxu0 0.0
    %318 = vmatprep.subr.mxu0 0.0
    %319 = vmatpush1.msra.mxu0 0.0
    %320 = vmatprep.subr.mxu0 0.0
    %321 = vmatpush1.msra.mxu0 0.0
    %322 = vmatprep.mubr.f32.mxu0 0.0
    %323 = vmatmul.mubr.f32.gmra.mrb[0].mxu0 %v241
    %v324 = vpop.f32.mrb[0].mxu0
    %v325 = vadd.f32 0.0, %v324
    %v326 = vpop.f32.mrb[0].mxu0
    %327 = vdwg.mxu0
    %v328 = vtanh.pop %v325
    %v329 = vadd.f32 %v241, %v328
    %330 = vst [vmem:[#allocation2] sm:$0xff] %v329
    %331 = vst [vmem:[%s5] sm:$0xff] %v329
    // Predicated region
    $region38: #{fused_policy_rollout.1} parent=1 // pred_check
      _
    $region39: #{fused_policy_rollout.1} parent=1 // pred_check_branch
      %333 = sbr.rel (0) target = $region41
    $region40: #{fused_policy_rollout.1} parent=1 // pred_region
      _
    $region41: #{fused_policy_rollout.1} parent=1 // pred_fallthru
      _
    // Predicated region
    $region42: #{fused_policy_rollout.1} parent=1 // pred_check
      _
    $region43: #{fused_policy_rollout.1} parent=1 // pred_check_branch
      %335 = sbr.rel (0) target = $region45
    $region44: #{fused_policy_rollout.1} parent=1 // pred_region
      _
    $region45: #{fused_policy_rollout.1} parent=1 // pred_fallthru
      _
    %336 = vsyncpa [#allocation4], 1
    %337 = vsyncpa [#allocation6], 1

</llo_original>
